<compile_context>
chip_gen: v7x
topology: tpu7x:2x2x1
jax: 0.10.0
libtpu: 0.0.40
codegen_flags: <defaults>
</compile_context>

<pallas_src>
import functools

import jax
import jax.numpy as jnp
from jax.experimental import pallas as pl
from jax.experimental.pallas import tpu as pltpu


def _round_up(x, m):
    return ((x + m - 1) // m) * m


def _round_down(x, m):
    return (x // m) * m


def _physical_vmem_bytes():
    """Trace-time VMEM capacity query with a conservative (v7x-safe) fallback."""
    try:
        return int(pltpu.get_tpu_info().vmem_capacity_bytes)
    except Exception:
        return 64 * 1024 * 1024


def _layernorm_kernel(x_ref, a_ref, b_ref, o_ref, *, eps, n_valid):
    # x_ref: (row_tile, F_eff); a_ref/b_ref: (1, F_eff)
    x = x_ref[...].astype(jnp.float32)
    f_eff = x.shape[-1]

    # Mean: padded feature lanes (if any) were zero-filled by the wrapper pad,
    # so a plain sum divided by the true feature count is already correct.
    mean = jnp.sum(x, axis=-1, keepdims=True) / jnp.float32(n_valid)
    diff = x - mean

    if n_valid != f_eff:
        # Padded lanes have diff == -mean, so mask them out of the variance only.
        lane = jax.lax.broadcasted_iota(jnp.int32, x.shape, dimension=x.ndim - 1)
        sq = jnp.where(lane < n_valid, diff * diff, 0.0)
    else:
        sq = diff * diff

    # Unbiased variance (ddof=1), matching torch.Tensor.std default.
    # NOTE: n_valid == 1 yields division by zero (inf/nan), same as torch.
    var = jnp.sum(sq, axis=-1, keepdims=True) / jnp.float32(n_valid - 1)
    std = jnp.sqrt(var)

    # Per-row reciprocal column + cheap VPU multiply instead of a broadcast divide.
    inv = pl.reciprocal(std + jnp.float32(eps), approx=False)

    a = a_ref[...].astype(jnp.float32)
    b = b_ref[...].astype(jnp.float32)
    y = a * (diff * inv) + b
    o_ref[...] = y.astype(o_ref.dtype)


def layer_norm(x, a_2, b_2, eps=1e-6):
    """x: (..., F); a_2, b_2: (F,). Returns same shape/dtype as x."""
    features = x.shape[-1]
    orig_shape = x.shape
    x2 = x.reshape(-1, features)
    rows = x2.shape[0]

    itemsize = jnp.dtype(x.dtype).itemsize
    # Sublane granularity for the second-to-last dim: 8 (f32), 16 (bf16), 32 (int8).
    sub = {4: 8, 2: 16, 1: 32}.get(itemsize, 8)

    # Skip feature padding entirely when the lane axis is already 128-aligned
    # (typical transformer hidden sizes) -> no jnp.pad / output-slice HBM copies.
    pad_features = (features % 128) != 0
    f_eff = _round_up(features, 128) if pad_features else features

    # Generation-aware VMEM budgets.
    phys_vmem = _physical_vmem_bytes()
    big_vmem = phys_vmem >= 128 * 1024 * 1024          # v5e / v6e
    vmem_limit_bytes = (64 if big_vmem else 32) * 1024 * 1024
    vmem_tile_budget = (40 if big_vmem else 16) * 1024 * 1024

    # Per-element VMEM cost: double-buffered input + output blocks (2x each)
    # plus ~3 full-tile f32 intermediates (upcast x, diff, y) in the kernel.
    per_elem_bytes = 4 * itemsize + 12
    row_bytes_vmem = f_eff * per_elem_bytes
    row_bytes_in = f_eff * itemsize

    rt_cap = max(sub, _round_down(vmem_tile_budget // row_bytes_vmem, sub))

    # Target ~4 MiB of input per block: amortizes the ~0.35 us per-step overhead
    # and sits in the 85%+ region of the measured HBM-roofline tiling curve.
    target_in_bytes = 4 * 1024 * 1024
    rt = max(sub, _round_down(target_in_bytes // row_bytes_in, sub))
    rt = min(rt, rt_cap)

    # Keep >= ~8 grid steps for large inputs so the "parallel" row axis can be
    # sharded across both v7x TensorCores (no effect on tiny inputs).
    rt = min(rt, max(sub, _round_up(pl.cdiv(rows, 8), sub)))
    # Do not over-tile tiny inputs.
    rt = min(rt, _round_up(rows, sub))

    if pad_features:
        # Zero-fill padded lanes (the kernel relies on this for the mean).
        x2 = jnp.pad(x2, ((0, 0), (0, f_eff - features)))
        a2 = jnp.pad(a_2.reshape(1, features), ((0, 0), (0, f_eff - features)))
        b2 = jnp.pad(b_2.reshape(1, features), ((0, 0), (0, f_eff - features)))
    else:
        a2 = a_2.reshape(1, features)
        b2 = b_2.reshape(1, features)

    # Ragged last row block handled by Pallas (rows are independent; any
    # garbage rows in the final block are computed but never stored).
    grid_rows = pl.cdiv(rows, rt)

    out = pl.pallas_call(
        functools.partial(_layernorm_kernel, eps=eps, n_valid=features),
        out_shape=jax.ShapeDtypeStruct((rows, f_eff), x.dtype),
        grid_spec=pltpu.PrefetchScalarGridSpec(
            num_scalar_prefetch=0,
            grid=(grid_rows,),
            in_specs=[
                pl.BlockSpec((rt, f_eff), lambda i: (i, 0)),
                pl.BlockSpec((1, f_eff), lambda i: (0, 0)),
                pl.BlockSpec((1, f_eff), lambda i: (0, 0)),
            ],
            out_specs=pl.BlockSpec((rt, f_eff), lambda i: (i, 0)),
        ),
        compiler_params=pltpu.CompilerParams(
            dimension_semantics=("parallel",),
            vmem_limit_bytes=vmem_limit_bytes,
        ),
    )(x2, a2, b2)

    if pad_features:
        out = out[:, :features]
    return out.reshape(orig_shape)


if __name__ == "__main__":
    key = jax.random.PRNGKey(0)
    batch, seq, hidden = 2, 8, 32

    x = jax.random.normal(key, (batch, seq, hidden), dtype=jnp.float32)

    # Deterministic parameter init matching nn.Parameter(torch.ones/zeros(features))
    a_2 = jnp.ones((hidden,), dtype=jnp.float32)
    b_2 = jnp.zeros((hidden,), dtype=jnp.float32)

    out = layer_norm(x, a_2, b_2, eps=1e-6)
    out = jax.block_until_ready(out)

    # Reference check in plain JAX (unbiased std, eps on std) - matches the
    # annotated-transformer LayerNorm module above.
    mean = jnp.mean(x, axis=-1, keepdims=True)
    std = jnp.std(x, axis=-1, keepdims=True, ddof=1)
    ref = a_2 * (x - mean) / (std + 1e-6) + b_2
    assert jnp.allclose(out, ref, atol=1e-5, rtol=1e-5), "mismatch vs reference"

    print("KERNEL_OK")
</pallas_src>

<mosaic_0001>
module attributes {stable_mosaic.version = 11 : i64} {
  func.func @_layernorm_kernel(%arg0: i32, %arg1: memref<8x128xf32, #tpu.memory_space<vmem>>, %arg2: memref<1x128xf32, #tpu.memory_space<vmem>>, %arg3: memref<1x128xf32, #tpu.memory_space<vmem>>, %arg4: memref<8x128xf32, #tpu.memory_space<vmem>>) attributes {dimension_semantics = [#tpu.dimension_semantics<parallel>], iteration_bounds = array<i64: 2>, scalar_prefetch = 0 : i64, scratch_operands = 0 : i64, tpu.core_type = #tpu.core_type<tc>, window_params = [{transform_indices = @transform_0, window_bounds = array<i64: 8, 128>}, {pipeline_mode = #tpu.pipeline_mode<synchronous>, transform_indices = @transform_1, window_bounds = array<i64: 1, 128>}, {pipeline_mode = #tpu.pipeline_mode<synchronous>, transform_indices = @transform_2, window_bounds = array<i64: 1, 128>}, {transform_indices = @transform_3, window_bounds = array<i64: 8, 128>}]} {
    %c0 = arith.constant 0 : index
    %c0_0 = arith.constant 0 : index
    %0 = vector.load %arg1[%c0, %c0_0] : memref<8x128xf32, #tpu.memory_space<vmem>>, vector<8x128xf32>
    %cst = arith.constant dense<0.000000e+00> : vector<8xf32>
    %1 = vector.multi_reduction <add>, %0, %cst [1] : vector<8x128xf32> to vector<8xf32>
    %2 = vector.shape_cast %1 : vector<8xf32> to vector<8x1xf32>
    %cst_1 = arith.constant 3.200000e+01 : f32
    %3 = vector.broadcast %cst_1 : f32 to vector<8x1xf32>
    %4 = arith.divf %2, %3 : vector<8x1xf32>
    %5 = vector.broadcast %4 : vector<8x1xf32> to vector<8x128xf32>
    %6 = arith.subf %0, %5 : vector<8x128xf32>
    %7 = tpu.iota {dimensions = array<i32: 1>} : vector<8x128xi32>
    %c32_i32 = arith.constant 32 : i32
    %8 = vector.broadcast %c32_i32 : i32 to vector<8x128xi32>
    %9 = arith.cmpi slt, %7, %8 : vector<8x128xi32>
    %10 = arith.mulf %6, %6 : vector<8x128xf32>
    %cst_2 = arith.constant 0.000000e+00 : f32
    %11 = vector.broadcast %cst_2 : f32 to vector<8x128xf32>
    %12 = arith.select %9, %10, %11 : vector<8x128xi1>, vector<8x128xf32>
    %cst_3 = arith.constant dense<0.000000e+00> : vector<8xf32>
    %13 = vector.multi_reduction <add>, %12, %cst_3 [1] : vector<8x128xf32> to vector<8xf32>
    %14 = vector.shape_cast %13 : vector<8xf32> to vector<8x1xf32>
    %cst_4 = arith.constant 3.100000e+01 : f32
    %15 = vector.broadcast %cst_4 : f32 to vector<8x1xf32>
    %16 = arith.divf %14, %15 : vector<8x1xf32>
    %17 = math.sqrt %16 : vector<8x1xf32>
    %cst_5 = arith.constant 9.99999997E-7 : f32
    %18 = vector.broadcast %cst_5 : f32 to vector<8x1xf32>
    %19 = arith.addf %17, %18 : vector<8x1xf32>
    %20 = tpu.reciprocal %19 : vector<8x1xf32> -> vector<8x1xf32>
    %c0_6 = arith.constant 0 : index
    %c0_7 = arith.constant 0 : index
    %21 = vector.load %arg2[%c0_6, %c0_7] : memref<1x128xf32, #tpu.memory_space<vmem>>, vector<1x128xf32>
    %c0_8 = arith.constant 0 : index
    %c0_9 = arith.constant 0 : index
    %22 = vector.load %arg3[%c0_8, %c0_9] : memref<1x128xf32, #tpu.memory_space<vmem>>, vector<1x128xf32>
    %23 = vector.broadcast %20 : vector<8x1xf32> to vector<8x128xf32>
    %24 = arith.mulf %6, %23 : vector<8x128xf32>
    %25 = vector.broadcast %21 : vector<1x128xf32> to vector<8x128xf32>
    %26 = arith.mulf %25, %24 : vector<8x128xf32>
    %27 = vector.broadcast %22 : vector<1x128xf32> to vector<8x128xf32>
    %28 = arith.addf %26, %27 : vector<8x128xf32>
    %c0_10 = arith.constant 0 : index
    %c0_11 = arith.constant 0 : index
    %29 = vector.load %arg4[%c0_10, %c0_11] : memref<8x128xf32, #tpu.memory_space<vmem>>, vector<8x128xf32>
    tpu.vector_store %arg4[%c0_10, %c0_11], %28 {strides = array<i32>} : memref<8x128xf32, #tpu.memory_space<vmem>>, vector<8x128xf32>,
    return
  }
  func.func @transform_0(%arg0: i32) -> (i32, i32) {
    %c0_i32 = arith.constant 0 : i32
    %c0_i32_0 = arith.constant 0 : i32
    return %arg0, %c0_i32 : i32, i32
  }
  func.func @transform_1(%arg0: i32) -> (i32, i32) {
    %c0_i32 = arith.constant 0 : i32
    %c0_i32_0 = arith.constant 0 : i32
    %c0_i32_1 = arith.constant 0 : i32
    return %c0_i32, %c0_i32_0 : i32, i32
  }
  func.func @transform_2(%arg0: i32) -> (i32, i32) {
    %c0_i32 = arith.constant 0 : i32
    %c0_i32_0 = arith.constant 0 : i32
    %c0_i32_1 = arith.constant 0 : i32
    return %c0_i32, %c0_i32_0 : i32, i32
  }
  func.func @transform_3(%arg0: i32) -> (i32, i32) {
    %c0_i32 = arith.constant 0 : i32
    %c0_i32_0 = arith.constant 0 : i32
    return %arg0, %c0_i32 : i32, i32
  }
}

</mosaic_0001>

<llo_original>
// kernel: tpu_custom_call.1
$region0: #{tpu_custom_call.1}
  #allocation0 [shape = 'u32[]', space=smem, size = 0x4, offset = 0x4, fixed_abs, tag = 'smem constant byte address 0x4 - core index']
  #allocation1 [shape = 'u32[144,128]{1,0:T(1,128)}', space=vmem, size = 0x12000, scoped, tag = 'internal scratch']
  %s0 = inlined_call_operand.hbm [shape: f32[16,128], index: 0, kind: input, shape index: {}]
  %s1 = inlined_call_operand.vmem [shape: f32[1,128], index: 1, kind: input, shape index: {}]
  %s2 = inlined_call_operand.vmem [shape: f32[1,128], index: 2, kind: input, shape index: {}]
  %s3 = inlined_call_operand.hbm [shape: f32[16,128], index: 3, kind: output, shape index: {}]
  %s4 = sld [smem:[#allocation0]]
  $region49: #{tpu_custom_call.1} parent=0
    _
  %s6 = ssub.s32 1, %s4
  %s7 = scalar_select 0, %s6, %s4
  $region1: #{tpu_custom_call.1} parent=0
    #allocation2 [shape = 'u8[8192]{0}', space=vmem, size = 0x2000, scoped, tag = 'input window, operand 0']
    #allocation3 [shape = 's32[2]{0}', space=sflag, size = 0x8, scoped, tag = 'scoped memory for tpu_custom_call.1']
    #allocation4 [shape = 's32[2]{0}', space=sflag, size = 0x8, scoped, tag = 'scoped memory for tpu_custom_call.1']
    #allocation5 [shape = 'u8[8192]{0}', space=vmem, size = 0x2000, scoped, tag = 'output window, operand 0']
    %8 = vsyncpa [#allocation3], 0
    %s9 = scalar_lea.sflag [#allocation3], 1
    %10 = vsyncpa %s9, 0
    %11 = vsyncpa [#allocation4], 0
    %s12 = scalar_lea.sflag [#allocation4], 1
    %13 = vsyncpa %s12, 0
    loop: start=0, step=1, limit=4
    $region2: #{tpu_custom_call.1} parent=1 // loop_pre_header
      _
    $region3: #{tpu_custom_call.1} parent=1 // loop_header
      %s15 = sphi 0, %s19
      %p16 = scmp.ge.s32.totalorder %s15, 4
      %s25 = sphi 0, %s27
      %s28 = sphi 0, %s25
      %s29 = sphi 0, %s28
      %s45 = sphi 0, %s29
      %s49 = sphi 0, %s49
      %s51 = sphi 0, %s49
      %s52 = sphi 0, %s51
      %s66 = sphi 0, %s52
      %s70 = sphi 0, %s70
      %s72 = sphi 0, %s70
      %s73 = sphi 0, %s72
      %s87 = sphi 0, %s73
      %s93 = sphi 0, %s95
      %s96 = sphi 0, %s93
      %s97 = sphi 0, %s96
      %s113 = sphi 0, %s97
    $region4: #{tpu_custom_call.1} parent=1 // loop_header_branch
      %18 = sbr.rel (%p16) target = $region8
    $region5: #{tpu_custom_call.1} parent=1 // loop_body
      %s20 = ssub.s32 %s15, 1
      %s21 = ssub.s32 %s15, 2
      %s22 = sadd.s32 %s15, 1
      %s23 = ssub.s32 %s15, %s22
      %p24 = scmp.eq.s32.totalorder %s23, 0
      %s26 = sadd.s32 %s25, 1
      %s27 = scalar_select %p24, %s25, %s26
      %p30 = pneg %p24
      %p31 = scmp.eq.s32.totalorder %s15, 1
      %p32 = por %p30, %p31
      %p33 = scmp.ne.s32.totalorder %s25, %s28
      %p34 = scmp.eq.s32.totalorder %s15, 0
      %p35 = por %p33, %p34
      %p36 = scmp.ne.s32.totalorder %s25, %s28
      %p37 = scmp.eq.s32.totalorder %s20, 1
      %p38 = por %p36, %p37
      %p39 = scmp.ne.s32.totalorder %s28, %s29
      %p40 = scmp.eq.s32.totalorder %s20, 0
      %p41 = por %p39, %p40
      %p42 = scmp.ne.s32.totalorder %s28, %s29
      %p43 = scmp.eq.s32.totalorder %s21, 1
      %p44 = por %p42, %p43
      %p46 = scmp.ne.s32.totalorder %s29, %s45
      %p47 = scmp.eq.s32.totalorder %s21, 0
      %p48 = por %p46, %p47
      %s50 = sadd.s32 %s49, 1
      %p53 = scmp.eq.s32.totalorder %s15, 1
      %p54 = scmp.ne.s32.totalorder %s49, %s51
      %p55 = scmp.eq.s32.totalorder %s15, 0
      %p56 = por %p54, %p55
      %p57 = scmp.ne.s32.totalorder %s49, %s51
      %p58 = scmp.eq.s32.totalorder %s20, 1
      %p59 = por %p57, %p58
      %p60 = scmp.ne.s32.totalorder %s51, %s52
      %p61 = scmp.eq.s32.totalorder %s20, 0
      %p62 = por %p60, %p61
      %p63 = scmp.ne.s32.totalorder %s51, %s52
      %p64 = scmp.eq.s32.totalorder %s21, 1
      %p65 = por %p63, %p64
      %p67 = scmp.ne.s32.totalorder %s52, %s66
      %p68 = scmp.eq.s32.totalorder %s21, 0
      %p69 = por %p67, %p68
      %s71 = sadd.s32 %s70, 1
      %p74 = scmp.eq.s32.totalorder %s15, 1
      %p75 = scmp.ne.s32.totalorder %s70, %s72
      %p76 = scmp.eq.s32.totalorder %s15, 0
      %p77 = por %p75, %p76
      %p78 = scmp.ne.s32.totalorder %s70, %s72
      %p79 = scmp.eq.s32.totalorder %s20, 1
      %p80 = por %p78, %p79
      %p81 = scmp.ne.s32.totalorder %s72, %s73
      %p82 = scmp.eq.s32.totalorder %s20, 0
      %p83 = por %p81, %p82
      %p84 = scmp.ne.s32.totalorder %s72, %s73
      %p85 = scmp.eq.s32.totalorder %s21, 1
      %p86 = por %p84, %p85
      %p88 = scmp.ne.s32.totalorder %s73, %s87
      %p89 = scmp.eq.s32.totalorder %s21, 0
      %p90 = por %p88, %p89
      %s91 = ssub.s32 %s15, %s22
      %p92 = scmp.eq.s32.totalorder %s91, 0
      %s94 = sadd.s32 %s93, 1
      %s95 = scalar_select %p92, %s93, %s94
      %p98 = pneg %p92
      %p99 = scmp.eq.s32.totalorder %s15, 1
      %p100 = por %p98, %p99
      %p101 = scmp.ne.s32.totalorder %s93, %s96
      %p102 = scmp.eq.s32.totalorder %s15, 0
      %p103 = por %p101, %p102
      %p104 = scmp.ne.s32.totalorder %s93, %s96
      %p105 = scmp.eq.s32.totalorder %s20, 1
      %p106 = por %p104, %p105
      %p107 = scmp.ne.s32.totalorder %s96, %s97
      %p108 = scmp.eq.s32.totalorder %s20, 0
      %p109 = por %p107, %p108
      %p110 = scmp.ne.s32.totalorder %s96, %s97
      %p111 = scmp.eq.s32.totalorder %s21, 1
      %p112 = por %p110, %p111
      %p114 = scmp.ne.s32.totalorder %s97, %s113
      %p115 = scmp.eq.s32.totalorder %s21, 0
      %p116 = por %p114, %p115
      %p117 = scmp.le.s32.totalorder 1, %s15
      %p118 = scmp.lt.s32.totalorder %s15, 3
      %p119 = pnand %p117, %p118
      %p120 = pneg %p119
      // Predicated region
      $region9: #{tpu_custom_call.1} parent=5 // pred_check
        _
      $region10: #{tpu_custom_call.1} parent=5 // pred_check_branch
        %122 = sbr.rel (%p119) target = $region12
      $region11: #{tpu_custom_call.1} parent=5 // pred_region
        %s123 = ssub.s32 %s15, 1
        // Predicated region
        $region13: #{tpu_custom_call.1} parent=11 // pred_check
          %p124 = pneg %p62
        $region14: #{tpu_custom_call.1} parent=11 // pred_check_branch
          %126 = sbr.rel (%p124) target = $region16
        $region15: #{tpu_custom_call.1} parent=11 // pred_region
          _
        $region16: #{tpu_custom_call.1} parent=11 // pred_fallthru
          _
        // Predicated region
        $region17: #{tpu_custom_call.1} parent=11 // pred_check
          %p127 = pneg %p83
        $region18: #{tpu_custom_call.1} parent=11 // pred_check_branch
          %129 = sbr.rel (%p127) target = $region20
        $region19: #{tpu_custom_call.1} parent=11 // pred_region
          _
        $region20: #{tpu_custom_call.1} parent=11 // pred_fallthru
          _
      $region12: #{tpu_custom_call.1} parent=5 // pred_fallthru
        _
      %p130 = scmp.lt.s32.totalorder %s15, 2
      // Predicated region
      $region21: #{tpu_custom_call.1} parent=5 // pred_check
        %p131 = pneg %p130
      $region22: #{tpu_custom_call.1} parent=5 // pred_check_branch
        %133 = sbr.rel (%p131) target = $region24
      $region23: #{tpu_custom_call.1} parent=5 // pred_region
        // Predicated region
        $region25: #{tpu_custom_call.1} parent=23 // pred_check
          %p134 = pneg %p35
        $region26: #{tpu_custom_call.1} parent=23 // pred_check_branch
          %136 = sbr.rel (%p134) target = $region28
        $region27: #{tpu_custom_call.1} parent=23 // pred_region
          %s137 = sand.u32 %s25, 1
          %s138 = scalar_lea.sflag [#allocation3], %s137
          %s139 = sand.u32 %s25, 1
          %s140 = smul.addr %s139, 8
          %s141 = scalar_lea.vmem [#allocation2], %s140
          %s143 = ssub.s32 128, 128
          %144 = vsyncadd %s138, %s143
          %s145 = smul.addr %s15, 128
          %s146 = scalar_lea.hbm %s0, %s145
          %s148 = sshll.u32 %s141, 4
          %s149 = int_to_ptr.vmem [resolvable:$true] %s148
          %151 = dma.hbm_to_vmem [thread:$0]  %s146, 128, %s149, %s138
        $region28: #{tpu_custom_call.1} parent=23 // pred_fallthru
          _
      $region24: #{tpu_custom_call.1} parent=5 // pred_fallthru
        _
      %p152 = scmp.le.s32.totalorder 1, %s15
      %p153 = scmp.lt.s32.totalorder %s15, 3
      %p154 = pnand %p152, %p153
      %p155 = pneg %p154
      // Predicated region
      $region29: #{tpu_custom_call.1} parent=5 // pred_check
        _
      $region30: #{tpu_custom_call.1} parent=5 // pred_check_branch
        %157 = sbr.rel (%p154) target = $region32
      $region31: #{tpu_custom_call.1} parent=5 // pred_region
        %s158 = ssub.s32 %s15, 1
        %s159 = sand.u32 %s28, 1
        %s160 = scalar_lea.sflag [#allocation3], %s159
        %s161 = sand.u32 %s28, 1
        %s162 = smul.addr %s161, 8
        %s163 = scalar_lea.vmem [#allocation2], %s162
        // Predicated region
        $region33: #{tpu_custom_call.1} parent=31 // pred_check
          %p164 = pneg %p41
        $region34: #{tpu_custom_call.1} parent=31 // pred_check_branch
          %166 = sbr.rel (%p164) target = $region36
        $region35: #{tpu_custom_call.1} parent=31 // pred_region
          %167 = dma.done %s160, 128
        $region36: #{tpu_custom_call.1} parent=31 // pred_fallthru
          _
        %s168 = sand.u32 %s28, 1
        %s169 = scalar_lea.sflag [#allocation3], %s168
        %s170 = sand.u32 %s28, 1
        %s171 = smul.addr %s170, 8
        %s172 = scalar_lea.vmem [#allocation2], %s171
        %p173 = pneg %p41
        %p174 = pneg %p38
        %p175 = pneg %p62
        %p176 = pneg %p59
        %p177 = pneg %p83
        %p178 = pneg %p80
        %p179 = pneg %p109
        %p180 = pneg %p106
        %s181 = sand.u32 %s96, 1
        %s182 = scalar_lea.sflag [#allocation4], %s181
        %s183 = sand.u32 %s96, 1
        %s184 = smul.addr %s183, 8
        %s185 = scalar_lea.vmem [#allocation5], %s184
        %v186 = vld [vmem:[%s163] sm:$0xff]
        %187 = vadd.xlane.f32.xlu0 %v186
        %v188 = vpop.xlane.xlu0 %187
        %v189 = vrcp.pop 32.0
        %v190 = vmul.f32 %v188, %v189
        %v191 = vsub.f32 %v186, %v190
        %v192 = vlaneseq
        %v193 = vand.u32 %v192, 127
        %vm194 = vcmp.lt.s32.totalorder %v193, 32
        %v195 = vmul.f32 %v191, %v191
        %v196 = vsel %vm194, %v195, 0.0
        %197 = vadd.xlane.f32.xlu0 %v196
        %v198 = vpop.xlane.xlu0 %197
        %v199 = vrcp.pop 31.0
        %v200 = vmul.f32 %v198, %v199
        %v201 = vrsqrt.pop %v200
        %v202 = vmul.f32 %v200, %v201
        %vm203 = vcmp.eq.f32.partialorder %v200, inf
        %v204 = vsel %vm203, %v200, %v202
        %vm205 = vcmp.eq.f32.partialorder %v200, 0.0
        %v206 = vand.u32 %v200, 2147483648
        %v207 = vsel %vm205, %v206, %v204
        %v208 = vadd.f32 %v207, 1e-06
        %v209 = vrcp.pop %v208
        %v210 = vld [vmem:[%s1] sm:$0x1]
        %v211 = vld [vmem:[%s2] sm:$0x1]
        %v212 = vmul.f32 %v191, %v209
        %v214 = vlaneseq
        %v215 = vshrl.u32 %v214, 7
        %v216 = vsub.s32 0, %v215
        %v217 = vrot.slane %v210, %v216
        %v219 = vmul.f32 %v217, %v212
        %v221 = vlaneseq
        %v222 = vshrl.u32 %v221, 7
        %v223 = vsub.s32 0, %v222
        %v224 = vrot.slane %v211, %v223
        %v226 = vadd.f32 %v219, %v224
        %227 = vst [vmem:[%s185] sm:$0xff] %v226
        %s228 = sand.u32 %s96, 1
        %s229 = scalar_lea.sflag [#allocation4], %s228
        %s230 = sand.u32 %s96, 1
        %s231 = smul.addr %s230, 8
        %s232 = scalar_lea.vmem [#allocation5], %s231
        // Predicated region
        $region37: #{tpu_custom_call.1} parent=31 // pred_check
          %p233 = pneg %p106
        $region38: #{tpu_custom_call.1} parent=31 // pred_check_branch
          %235 = sbr.rel (%p233) target = $region40
        $region39: #{tpu_custom_call.1} parent=31 // pred_region
          %s237 = ssub.s32 128, 128
          %238 = vsyncadd %s229, %s237
          %s239 = smul.addr %s20, 128
          %s240 = scalar_lea.hbm %s3, %s239
          %s242 = sshll.u32 %s232, 4
          %s243 = int_to_ptr.vmem [resolvable:$true] %s242
          %245 = dma.vmem_to_hbm [thread:$0]  %s243, 128, %s240, %s229
        $region40: #{tpu_custom_call.1} parent=31 // pred_fallthru
          _
      $region32: #{tpu_custom_call.1} parent=5 // pred_fallthru
        _
      %p246 = scmp.le.s32.totalorder 2, %s15
      // Predicated region
      $region41: #{tpu_custom_call.1} parent=5 // pred_check
        %p247 = pneg %p246
      $region42: #{tpu_custom_call.1} parent=5 // pred_check_branch
        %249 = sbr.rel (%p247) target = $region44
      $region43: #{tpu_custom_call.1} parent=5 // pred_region
        %s250 = ssub.s32 %s15, 2
        // Predicated region
        $region45: #{tpu_custom_call.1} parent=43 // pred_check
          %p251 = pneg %p112
        $region46: #{tpu_custom_call.1} parent=43 // pred_check_branch
          %253 = sbr.rel (%p251) target = $region48
        $region47: #{tpu_custom_call.1} parent=43 // pred_region
          %s254 = sand.u32 %s97, 1
          %s255 = scalar_lea.sflag [#allocation4], %s254
          %s256 = sand.u32 %s97, 1
          %s257 = smul.addr %s256, 8
          %s258 = scalar_lea.vmem [#allocation5], %s257
          %259 = dma.done %s255, 128
        $region48: #{tpu_custom_call.1} parent=43 // pred_fallthru
          _
      $region44: #{tpu_custom_call.1} parent=5 // pred_fallthru
        _
    $region6: #{tpu_custom_call.1} parent=1 // loop_footer
      %s19 = sadd.s32 1, %s15
    $region7: #{tpu_custom_call.1} parent=1 // loop_footer_branch
      %14 = sbr.rel target = $region3
    $region8: #{tpu_custom_call.1} parent=1 // loop_exit
      _
    %260 = vsyncpa [#allocation3], 1
    %s261 = scalar_lea.sflag [#allocation3], 1
    %262 = vsyncpa %s261, 1
    %263 = vsyncpa [#allocation4], 1
    %s264 = scalar_lea.sflag [#allocation4], 1
    %265 = vsyncpa %s264, 1

</llo_original>
